<compile_context>
chip_gen: v7x
topology: tpu7x:2x2x1
jax: 0.10.0
libtpu: 0.0.40
codegen_flags: <defaults>
</compile_context>

<pallas_src>
import functools
import math

import jax
import jax.numpy as jnp
from jax import lax
from jax.experimental import pallas as pl
from jax.experimental.pallas import tpu as pltpu


def _round_up(a, m):
    return ((a + m - 1) // m) * m


def _block_vmem_bytes(block_shape, dtype):
    """Rough VMEM footprint of one block, padded to the (8, 128) tile grid."""
    dims = list(block_shape)
    dims[-1] = _round_up(dims[-1], 128)
    if len(dims) >= 2:
        dims[-2] = _round_up(dims[-2], 8)
    return math.prod(dims) * jnp.dtype(dtype).itemsize


# -----------------------------------------------------------------------------
# Pallas kernel: one batch tile of the fused chained-affine forward pass
# (batch on the lane axis everywhere).
# -----------------------------------------------------------------------------
def _chained_affine_kernel(x_ref, c_ref, w_ref, b_ref, z_ref, lj_ref, *,
                           num_mappings, dims_in, batch_size, batch_tile,
                           mask_tail):
    """Shapes inside the kernel (TB = batch tile, D = dims_in, C = dims_c, K = chain):

      x_ref : (D, TB)        c_ref : (C, TB)
      w_ref : (2*K*D, C)     b_ref : (2*K*D, 1)   [all K s/t heads fused, transposed]
      z_ref : (D, TB)        lj_ref: (1, TB)      [lane-dense log_det row]
    """
    K, D = num_mappings, dims_in

    x = x_ref[...].astype(jnp.float32)            # (D, TB)
    cond = c_ref[...].astype(jnp.float32)         # (C, TB)

    # One MXU GEMM producing every s_k and t_k at once, batch on the lanes.
    st = jnp.dot(w_ref[...].astype(jnp.float32), cond,
                 preferred_element_type=jnp.float32)          # (2*K*D, TB)
    st = st + b_ref[...].astype(jnp.float32)                  # lane-broadcast bias

    if mask_tail:
        # Grid does not divide the batch: zero the out-of-bounds lanes so the
        # clipped tail block never produces inf/NaN (outputs there are dropped).
        lane = lax.broadcasted_iota(jnp.int32, (1, batch_tile), 1)
        valid = (pl.program_id(0) * batch_tile + lane) < batch_size
        st = jnp.where(valid, st, 0.0)
        x = jnp.where(valid, x, 0.0)

    s_all = st[:K * D, :]           # (K*D, TB)  scales      (sublane-aligned slice)
    t_all = st[K * D:, :]           # (K*D, TB)  translations

    # Hoisted exp: one lane-dense EUP pass over the whole s block.
    es_all = jnp.exp(s_all)

    # Sequential affine chain (true data dependence on x). K is a small static
    # chain length, so a Python unroll is fine here.
    # TODO(synk): for deep chains switch to lax.fori_loop(..., unroll=True) to
    # bound vreg live ranges.
    for k in range(K):
        x = x * es_all[k * D:(k + 1) * D, :] + t_all[k * D:(k + 1) * D, :]

    z_ref[...] = x.astype(z_ref.dtype)

    # Accumulated log-jacobian = sum over all k, d of s -> one sublane reduce,
    # written back as a lane-dense (1, TB) row.
    lj_ref[...] = jnp.sum(s_all, axis=0, keepdims=True)


# -----------------------------------------------------------------------------
# Host-side helpers / wrapper
# -----------------------------------------------------------------------------
def fuse_chain_params(ws, bs, wt, bt):
    """Fuse the K (s, t) heads into a single transposed GEMM operand.

    Returns:
      w_all: (2*K*D, C)  rows [k*D+d] = ws[k, :, d]; rows [K*D + k*D+d] = wt[k, :, d]
      b_all: (2*K*D, 1)
    """
    K, C, D = ws.shape
    w_s = jnp.transpose(ws, (0, 2, 1)).reshape(K * D, C)
    w_t = jnp.transpose(wt, (0, 2, 1)).reshape(K * D, C)
    w_all = jnp.concatenate([w_s, w_t], axis=0)                     # (2*K*D, C)
    b_all = jnp.concatenate([bs.reshape(K * D, 1),
                             bt.reshape(K * D, 1)], axis=0)         # (2*K*D, 1)
    return w_all, b_all


def _pick_batch_tile(B, batch_tile):
    """Choose a lane-tile (multiple of 128 when tiling) and grid size."""
    batch_tile = max(128, _round_up(int(batch_tile), 128))
    if B <= 256:
        # Single full-extent block (ragged B allowed: block dim == array dim).
        return B, 1, False
    # Aim for at least two tiles so the "parallel" axis feeds both TensorCores.
    tb = min(batch_tile, _round_up(pl.cdiv(B, 2), 128))
    num_tiles = pl.cdiv(B, tb)
    mask_tail = (B % tb) != 0
    return tb, num_tiles, mask_tail


def _chained_forward_fused(x, condition, w_all, b_all, *, num_mappings,
                           batch_tile=4096):
    B, D = x.shape
    C = condition.shape[1]
    K = num_mappings

    # Lane-dense "batch-in-lanes" layout (pure layout plumbing in the wrapper).
    xT = x.T                       # (D, B)
    cT = condition.T               # (C, B)

    tb, num_tiles, mask_tail = _pick_batch_tile(B, batch_tile)

    # VMEM budget: double-buffered blocks + in-kernel st/exp temporaries.
    est = 2 * (
        _block_vmem_bytes((D, tb), x.dtype)                  # x tile
        + _block_vmem_bytes((C, tb), condition.dtype)        # condition tile
        + _block_vmem_bytes((2 * K * D, C), w_all.dtype)     # fused weights
        + _block_vmem_bytes((2 * K * D, 1), b_all.dtype)     # fused biases
        + _block_vmem_bytes((D, tb), x.dtype)                # z tile
        + _block_vmem_bytes((1, tb), jnp.float32)            # log_det row
    ) + 4 * _block_vmem_bytes((2 * K * D, tb), jnp.float32)  # st / exp temporaries
    vmem_limit = int(min(48 * 1024 * 1024,
                         max(16 * 1024 * 1024, est + (8 << 20))))

    kernel = functools.partial(
        _chained_affine_kernel, num_mappings=K, dims_in=D,
        batch_size=B, batch_tile=tb, mask_tail=mask_tail)

    zT, lj = pl.pallas_call(
        kernel,
        out_shape=(
            jax.ShapeDtypeStruct((D, B), x.dtype),
            jax.ShapeDtypeStruct((1, B), jnp.float32),
        ),
        grid_spec=pltpu.PrefetchScalarGridSpec(
            num_scalar_prefetch=0,
            grid=(num_tiles,),
            in_specs=[
                pl.BlockSpec((D, tb), lambda i: (0, i)),            # x tile (D, TB)
                pl.BlockSpec((C, tb), lambda i: (0, i)),            # cond tile (C, TB)
                pl.BlockSpec((2 * K * D, C), lambda i: (0, 0)),     # fused weights
                pl.BlockSpec((2 * K * D, 1), lambda i: (0, 0)),     # fused biases
            ],
            out_specs=[
                pl.BlockSpec((D, tb), lambda i: (0, i)),            # z tile (lane-dense)
                pl.BlockSpec((1, tb), lambda i: (0, i)),            # log_det (lane-dense)
            ],
        ),
        compiler_params=pltpu.CompilerParams(
            dimension_semantics=("parallel",),   # batch grid feeds both TCs on v7x
            vmem_limit_bytes=vmem_limit,
        ),
    )(xT, cT, w_all, b_all)

    return zT.T, lj.reshape(B)


def chained_mapping_forward(x, condition, ws, bs, wt, bt, *, batch_tile=4096):
    """ChainedMapping.forward(x, condition) -> (z, log_det).

    Args:
      x:         (B, dims_in)  float32
      condition: (B, dims_c)   float32
      ws, wt:    (K, dims_c, dims_in)  per-mapping weights
      bs, bt:    (K, 1, dims_in)       per-mapping biases
    Returns:
      z:       (B, dims_in)
      log_det: (B,)
    """
    w_all, b_all = fuse_chain_params(ws, bs, wt, bt)
    return _chained_forward_fused(x, condition, w_all, b_all,
                                  num_mappings=int(ws.shape[0]),
                                  batch_tile=batch_tile)


# -----------------------------------------------------------------------------
# Pure-JAX reference (mirrors the PyTorch ChainedMapping._forward loop)
# -----------------------------------------------------------------------------
def chained_mapping_forward_ref(x, condition, ws, bs, wt, bt):
    log_jac_all = jnp.zeros((x.shape[0],), jnp.float32)
    for k in range(ws.shape[0]):
        s = condition @ ws[k] + bs[k]
        t = condition @ wt[k] + bt[k]
        x = x * jnp.exp(s) + t
        log_jac_all = log_jac_all + jnp.sum(s, axis=-1)
    return x, log_jac_all


# -----------------------------------------------------------------------------
# Thin Python wrapper mirroring the Mapping / ChainedMapping API surface
# -----------------------------------------------------------------------------
class PallasChainedMapping:
    def __init__(self, dims_in, dims_c, ws, bs, wt, bt, *, batch_tile=4096):
        self.dims_in = dims_in
        self.dims_c = dims_c
        self.num_mappings = int(ws.shape[0])
        self.batch_tile = batch_tile
        # Fused, transposed GEMM operands are built once here (not per call).
        self.w_all, self.b_all = fuse_chain_params(ws, bs, wt, bt)

    def _check_inputs(self, x, condition):
        if x.ndim != 2 or x.shape[1] != self.dims_in:
            raise ValueError(f"Expected input shape (?, {self.dims_in}), got {x.shape}")
        if self.dims_c is None:
            return
        if condition is None:
            raise ValueError("Expected condition")
        if condition.ndim != 2 or condition.shape[1] != self.dims_c:
            raise ValueError(
                f"Expected condition shape (?, {self.dims_c}), got {condition.shape}")
        if x.shape[0] != condition.shape[0]:
            raise ValueError("Number of input items must equal number of conditions.")

    def forward(self, x, condition=None):
        self._check_inputs(x, condition)
        if self.dims_c is None:
            # TODO(synk): unconditional (dims_c=None) chain is not supported by the
            # fused conditional-affine kernel; would need a bias-only variant.
            raise NotImplementedError(
                "PallasChainedMapping.forward requires dims_c / a condition tensor.")
        return _chained_forward_fused(x, condition, self.w_all, self.b_all,
                                      num_mappings=self.num_mappings,
                                      batch_tile=self.batch_tile)

    def log_det(self, x, condition=None, inverse=False):
        if inverse:
            # TODO(synk): inverse-pass log-det (and _inverse) not implemented.
            raise NotImplementedError("inverse log_det not implemented")
        _, lj = self.forward(x, condition)
        return lj


if __name__ == "__main__":
    key = jax.random.PRNGKey(0)

    # Small shapes consistent with Mapping.forward: (batch, n_features).
    batch, dims_in, dims_c, n_mappings = 16, 16, 8, 3

    k_x, k_c, k_ws, k_bs, k_wt, k_bt, k_big = jax.random.split(key, 7)
    x = jax.random.normal(k_x, (batch, dims_in), dtype=jnp.float32)
    condition = jax.random.normal(k_c, (batch, dims_c), dtype=jnp.float32)

    # Deterministic, small-scale parameter init (synthetic weights).
    ws = 0.1 * jax.random.normal(k_ws, (n_mappings, dims_c, dims_in), jnp.float32)
    bs = 0.1 * jax.random.normal(k_bs, (n_mappings, 1, dims_in), jnp.float32)
    wt = 0.1 * jax.random.normal(k_wt, (n_mappings, dims_c, dims_in), jnp.float32)
    bt = 0.1 * jax.random.normal(k_bt, (n_mappings, 1, dims_in), jnp.float32)

    mapping = PallasChainedMapping(dims_in, dims_c, ws, bs, wt, bt)

    # Full-batch path (single full-extent block).
    z, log_det = mapping.forward(x, condition)
    z = jax.block_until_ready(z)
    log_det = jax.block_until_ready(log_det)
    z_ref, log_det_ref = chained_mapping_forward_ref(x, condition, ws, bs, wt, bt)

    assert z.shape == (batch, dims_in)
    assert log_det.shape == (batch,)
    assert jnp.allclose(z, z_ref, atol=1e-5, rtol=1e-4)
    assert jnp.allclose(log_det, log_det_ref, atol=1e-5, rtol=1e-4)

    # Ragged small batch (block dim == full array dim; 13 is not a multiple of 8).
    zr, ljr = chained_mapping_forward(x[:13], condition[:13], ws, bs, wt, bt)
    zr = jax.block_until_ready(zr)
    zr_ref, ljr_ref = chained_mapping_forward_ref(x[:13], condition[:13], ws, bs, wt, bt)
    assert zr.shape == (13, dims_in) and ljr.shape == (13,)
    assert jnp.allclose(zr, zr_ref, atol=1e-5, rtol=1e-4)
    assert jnp.allclose(ljr, ljr_ref, atol=1e-5, rtol=1e-4)

    # Multi-tile path with a clipped + masked tail tile (no wrapper-side padding).
    big_batch = 1000
    kb_x, kb_c = jax.random.split(k_big)
    xb = jax.random.normal(kb_x, (big_batch, dims_in), jnp.float32)
    cb = jax.random.normal(kb_c, (big_batch, dims_c), jnp.float32)
    zb, ljb = chained_mapping_forward(xb, cb, ws, bs, wt, bt, batch_tile=256)
    zb = jax.block_until_ready(zb)
    zb_ref, ljb_ref = chained_mapping_forward_ref(xb, cb, ws, bs, wt, bt)
    assert zb.shape == (big_batch, dims_in) and ljb.shape == (big_batch,)
    assert jnp.allclose(zb, zb_ref, atol=1e-5, rtol=1e-4)
    assert jnp.allclose(ljb, ljb_ref, atol=1e-5, rtol=1e-4)

    print("KERNEL_OK")
</pallas_src>

<mosaic_0001>
module attributes {stable_mosaic.version = 11 : i64} {
  func.func @_chained_affine_kernel(%arg0: i32, %arg1: memref<16x16xf32, #tpu.memory_space<vmem>>, %arg2: memref<8x16xf32, #tpu.memory_space<vmem>>, %arg3: memref<96x8xf32, #tpu.memory_space<vmem>>, %arg4: memref<96x1xf32, #tpu.memory_space<vmem>>, %arg5: memref<16x16xf32, #tpu.memory_space<vmem>>, %arg6: memref<1x16xf32, #tpu.memory_space<vmem>>) attributes {dimension_semantics = [#tpu.dimension_semantics<parallel>], iteration_bounds = array<i64: 1>, scalar_prefetch = 0 : i64, scratch_operands = 0 : i64, tpu.core_type = #tpu.core_type<tc>, window_params = [{transform_indices = @transform_0, window_bounds = array<i64: 16, 16>}, {transform_indices = @transform_1, window_bounds = array<i64: 8, 16>}, {pipeline_mode = #tpu.pipeline_mode<synchronous>, transform_indices = @transform_2, window_bounds = array<i64: 96, 8>}, {pipeline_mode = #tpu.pipeline_mode<synchronous>, transform_indices = @transform_3, window_bounds = array<i64: 96, 1>}, {transform_indices = @transform_4, window_bounds = array<i64: 16, 16>}, {transform_indices = @transform_5, window_bounds = array<i64: 1, 16>}]} {
    %c0 = arith.constant 0 : index
    %c0_0 = arith.constant 0 : index
    %0 = vector.load %arg1[%c0, %c0_0] : memref<16x16xf32, #tpu.memory_space<vmem>>, vector<16x16xf32>
    %c0_1 = arith.constant 0 : index
    %c0_2 = arith.constant 0 : index
    %1 = vector.load %arg2[%c0_1, %c0_2] : memref<8x16xf32, #tpu.memory_space<vmem>>, vector<8x16xf32>
    %c0_3 = arith.constant 0 : index
    %c0_4 = arith.constant 0 : index
    %2 = vector.load %arg3[%c0_3, %c0_4] : memref<96x8xf32, #tpu.memory_space<vmem>>, vector<96x8xf32>
    %cst = arith.constant dense<0.000000e+00> : vector<96x16xf32>
    %3 = tpu.matmul %2, %1, %cst {dimension_numbers = #tpu.dot_dimension_numbers<[1], [0], [0], [1], [0, 0, 1, 1], [], []>} : vector<96x8xf32>, vector<8x16xf32>, vector<96x16xf32> -> vector<96x16xf32>
    %c0_5 = arith.constant 0 : index
    %c0_6 = arith.constant 0 : index
    %4 = vector.load %arg4[%c0_5, %c0_6] : memref<96x1xf32, #tpu.memory_space<vmem>>, vector<96x1xf32>
    %5 = vector.broadcast %4 : vector<96x1xf32> to vector<96x16xf32>
    %6 = arith.addf %3, %5 : vector<96x16xf32>
    %7 = vector.extract_strided_slice %6 {offsets = [0, 0], sizes = [48, 16], strides = [1, 1]} : vector<96x16xf32> to vector<48x16xf32>
    %8 = vector.extract_strided_slice %6 {offsets = [48, 0], sizes = [48, 16], strides = [1, 1]} : vector<96x16xf32> to vector<48x16xf32>
    %9 = math.exp %7 : vector<48x16xf32>
    %10 = vector.extract_strided_slice %9 {offsets = [0, 0], sizes = [16, 16], strides = [1, 1]} : vector<48x16xf32> to vector<16x16xf32>
    %11 = arith.mulf %0, %10 : vector<16x16xf32>
    %12 = vector.extract_strided_slice %8 {offsets = [0, 0], sizes = [16, 16], strides = [1, 1]} : vector<48x16xf32> to vector<16x16xf32>
    %13 = arith.addf %11, %12 : vector<16x16xf32>
    %14 = vector.extract_strided_slice %9 {offsets = [16, 0], sizes = [16, 16], strides = [1, 1]} : vector<48x16xf32> to vector<16x16xf32>
    %15 = arith.mulf %13, %14 : vector<16x16xf32>
    %16 = vector.extract_strided_slice %8 {offsets = [16, 0], sizes = [16, 16], strides = [1, 1]} : vector<48x16xf32> to vector<16x16xf32>
    %17 = arith.addf %15, %16 : vector<16x16xf32>
    %18 = vector.extract_strided_slice %9 {offsets = [32, 0], sizes = [16, 16], strides = [1, 1]} : vector<48x16xf32> to vector<16x16xf32>
    %19 = arith.mulf %17, %18 : vector<16x16xf32>
    %20 = vector.extract_strided_slice %8 {offsets = [32, 0], sizes = [16, 16], strides = [1, 1]} : vector<48x16xf32> to vector<16x16xf32>
    %21 = arith.addf %19, %20 : vector<16x16xf32>
    %c0_7 = arith.constant 0 : index
    %c0_8 = arith.constant 0 : index
    %22 = vector.load %arg5[%c0_7, %c0_8] : memref<16x16xf32, #tpu.memory_space<vmem>>, vector<16x16xf32>
    tpu.vector_store %arg5[%c0_7, %c0_8], %21 {strides = array<i32>} : memref<16x16xf32, #tpu.memory_space<vmem>>, vector<16x16xf32>,
    %cst_9 = arith.constant dense<0.000000e+00> : vector<16xf32>
    %23 = vector.multi_reduction <add>, %7, %cst_9 [0] : vector<48x16xf32> to vector<16xf32>
    %24 = vector.shape_cast %23 : vector<16xf32> to vector<1x16xf32>
    %c0_10 = arith.constant 0 : index
    %c0_11 = arith.constant 0 : index
    %25 = vector.load %arg6[%c0_10, %c0_11] : memref<1x16xf32, #tpu.memory_space<vmem>>, vector<1x16xf32>
    tpu.vector_store %arg6[%c0_10, %c0_11], %24 {strides = array<i32>} : memref<1x16xf32, #tpu.memory_space<vmem>>, vector<1x16xf32>,
    return
  }
  func.func @transform_0(%arg0: i32) -> (i32, i32) {
    %c0_i32 = arith.constant 0 : i32
    %c0_i32_0 = arith.constant 0 : i32
    return %c0_i32, %arg0 : i32, i32
  }
  func.func @transform_1(%arg0: i32) -> (i32, i32) {
    %c0_i32 = arith.constant 0 : i32
    %c0_i32_0 = arith.constant 0 : i32
    return %c0_i32, %arg0 : i32, i32
  }
  func.func @transform_2(%arg0: i32) -> (i32, i32) {
    %c0_i32 = arith.constant 0 : i32
    %c0_i32_0 = arith.constant 0 : i32
    %c0_i32_1 = arith.constant 0 : i32
    return %c0_i32, %c0_i32_0 : i32, i32
  }
  func.func @transform_3(%arg0: i32) -> (i32, i32) {
    %c0_i32 = arith.constant 0 : i32
    %c0_i32_0 = arith.constant 0 : i32
    %c0_i32_1 = arith.constant 0 : i32
    return %c0_i32, %c0_i32_0 : i32, i32
  }
  func.func @transform_4(%arg0: i32) -> (i32, i32) {
    %c0_i32 = arith.constant 0 : i32
    %c0_i32_0 = arith.constant 0 : i32
    return %c0_i32, %arg0 : i32, i32
  }
  func.func @transform_5(%arg0: i32) -> (i32, i32) {
    %c0_i32 = arith.constant 0 : i32
    %c0_i32_0 = arith.constant 0 : i32
    return %c0_i32, %arg0 : i32, i32
  }
}

</mosaic_0001>

<llo_original>
// kernel: tpu_custom_call.1
$region0: #{tpu_custom_call.1}
  #allocation0 [shape = 'u32[]', space=smem, size = 0x4, offset = 0x4, fixed_abs, tag = 'smem constant byte address 0x4 - core index']
  #allocation1 [shape = 'u32[144,128]{1,0:T(1,128)}', space=vmem, size = 0x12000, scoped, tag = 'internal scratch']
  %s0 = inlined_call_operand.vmem [shape: f32[16,16], index: 0, kind: input, shape index: {}]
  %s1 = inlined_call_operand.vmem [shape: f32[8,16], index: 1, kind: input, shape index: {}]
  %s2 = inlined_call_operand.vmem [shape: f32[96,8], index: 2, kind: input, shape index: {}]
  %s3 = inlined_call_operand.vmem [shape: f32[96,1], index: 3, kind: input, shape index: {}]
  %s4 = inlined_call_operand.hbm [shape: f32[16,16], index: 4, kind: output, shape index: {0}]
  %s5 = inlined_call_operand.hbm [shape: f32[1,16], index: 5, kind: output, shape index: {1}]
  %6 = xla_tuple %s4, %s5
  %s7 = sld [smem:[#allocation0]]
  $region34: #{tpu_custom_call.1} parent=0
    _
  %s9 = ssub.s32 1, %s7
  %s10 = scalar_select 0, %s9, %s7
  $region1: #{tpu_custom_call.1} parent=0
    #allocation2 [shape = 'u8[8192]{0}', space=vmem, size = 0x2000, scoped, tag = 'output window, operand 0, single buffered']
    #allocation3 [shape = 's32[1]{0}', space=sflag, size = 0x4, scoped, tag = 'scoped memory for tpu_custom_call.1']
    #allocation4 [shape = 'u8[512]{0}', space=vmem, size = 0x400, scoped, tag = 'output window, operand 1, single buffered']
    #allocation5 [shape = 's32[1]{0}', space=sflag, size = 0x4, scoped, tag = 'scoped memory for tpu_custom_call.1']
    %11 = vsyncpa [#allocation3], 0
    %12 = vsyncpa [#allocation5], 0
    // Predicated region
    $region2: #{tpu_custom_call.1} parent=1 // pred_check
      _
    $region3: #{tpu_custom_call.1} parent=1 // pred_check_branch
      %14 = sbr.rel (0) target = $region5
    $region4: #{tpu_custom_call.1} parent=1 // pred_region
      _
    $region5: #{tpu_custom_call.1} parent=1 // pred_fallthru
      _
    // Predicated region
    $region6: #{tpu_custom_call.1} parent=1 // pred_check
      _
    $region7: #{tpu_custom_call.1} parent=1 // pred_check_branch
      %16 = sbr.rel (0) target = $region9
    $region8: #{tpu_custom_call.1} parent=1 // pred_region
      _
    $region9: #{tpu_custom_call.1} parent=1 // pred_fallthru
      _
    // Predicated region
    $region10: #{tpu_custom_call.1} parent=1 // pred_check
      _
    $region11: #{tpu_custom_call.1} parent=1 // pred_check_branch
      %18 = sbr.rel (0) target = $region13
    $region12: #{tpu_custom_call.1} parent=1 // pred_region
      _
    $region13: #{tpu_custom_call.1} parent=1 // pred_fallthru
      _
    // Predicated region
    $region14: #{tpu_custom_call.1} parent=1 // pred_check
      _
    $region15: #{tpu_custom_call.1} parent=1 // pred_check_branch
      %20 = sbr.rel (0) target = $region17
    $region16: #{tpu_custom_call.1} parent=1 // pred_region
      _
    $region17: #{tpu_custom_call.1} parent=1 // pred_fallthru
      _
    %v21 = vld [vmem:[%s0] sm:$0xff]
    %v22 = vld [vmem:[%s0 + $0x8] sm:$0xff]
    %v23 = vld [vmem:[%s1] sm:$0xff]
    %v24 = vld [vmem:[%s2] sm:$0xff]
    %v25 = vld [vmem:[%s2 + $0x8] sm:$0xff]
    %v26 = vld [vmem:[%s2 + $0x10] sm:$0xff]
    %v27 = vld [vmem:[%s2 + $0x18] sm:$0xff]
    %v28 = vld [vmem:[%s2 + $0x20] sm:$0xff]
    %v29 = vld [vmem:[%s2 + $0x28] sm:$0xff]
    %v30 = vld [vmem:[%s2 + $0x30] sm:$0xff]
    %v31 = vld [vmem:[%s2 + $0x38] sm:$0xff]
    %v32 = vld [vmem:[%s2 + $0x40] sm:$0xff]
    %v33 = vld [vmem:[%s2 + $0x48] sm:$0xff]
    %v34 = vld [vmem:[%s2 + $0x50] sm:$0xff]
    %v35 = vld [vmem:[%s2 + $0x58] sm:$0xff]
    %v36 = vld [vmem:[%s3] sm:$0xff]
    %v37 = vld [vmem:[%s3 + $0x8] sm:$0xff]
    %v38 = vld [vmem:[%s3 + $0x10] sm:$0xff]
    %v39 = vld [vmem:[%s3 + $0x18] sm:$0xff]
    %v40 = vld [vmem:[%s3 + $0x20] sm:$0xff]
    %v41 = vld [vmem:[%s3 + $0x28] sm:$0xff]
    %v42 = vld [vmem:[%s3 + $0x30] sm:$0xff]
    %v43 = vld [vmem:[%s3 + $0x38] sm:$0xff]
    %v44 = vld [vmem:[%s3 + $0x40] sm:$0xff]
    %v45 = vld [vmem:[%s3 + $0x48] sm:$0xff]
    %v46 = vld [vmem:[%s3 + $0x50] sm:$0xff]
    %v47 = vld [vmem:[%s3 + $0x58] sm:$0xff]
    %49 = vset.pattern.permute.xlu0 0
    %50 = vperm.xlu0 %49, %v36
    %v51 = vpop.permute.xlu0 %50
    %54 = vset.pattern.permute.xlu0 0
    %55 = vperm.xlu0 %54, %v37
    %v56 = vpop.permute.xlu0 %55
    %59 = vset.pattern.permute.xlu0 0
    %60 = vperm.xlu0 %59, %v38
    %v61 = vpop.permute.xlu0 %60
    %64 = vset.pattern.permute.xlu0 0
    %65 = vperm.xlu0 %64, %v39
    %v66 = vpop.permute.xlu0 %65
    %69 = vset.pattern.permute.xlu0 0
    %70 = vperm.xlu0 %69, %v40
    %v71 = vpop.permute.xlu0 %70
    %74 = vset.pattern.permute.xlu0 0
    %75 = vperm.xlu0 %74, %v41
    %v76 = vpop.permute.xlu0 %75
    %79 = vset.pattern.permute.xlu0 0
    %80 = vperm.xlu0 %79, %v42
    %v81 = vpop.permute.xlu0 %80
    %84 = vset.pattern.permute.xlu0 0
    %85 = vperm.xlu0 %84, %v43
    %v86 = vpop.permute.xlu0 %85
    %89 = vset.pattern.permute.xlu0 0
    %90 = vperm.xlu0 %89, %v44
    %v91 = vpop.permute.xlu0 %90
    %94 = vset.pattern.permute.xlu0 0
    %95 = vperm.xlu0 %94, %v45
    %v96 = vpop.permute.xlu0 %95
    %99 = vset.pattern.permute.xlu0 0
    %100 = vperm.xlu0 %99, %v46
    %v101 = vpop.permute.xlu0 %100
    %104 = vset.pattern.permute.xlu0 0
    %105 = vperm.xlu0 %104, %v47
    %v106 = vpop.permute.xlu0 %105
    %vm108 = vcmask 64512
    %v110 = vsel %vm108, %v24, 0
    %v113 = vsel %vm108, %v25, 0
    %v116 = vsel %vm108, %v26, 0
    %v119 = vsel %vm108, %v27, 0
    %v122 = vsel %vm108, %v28, 0
    %v125 = vsel %vm108, %v29, 0
    %v128 = vsel %vm108, %v30, 0
    %v131 = vsel %vm108, %v31, 0
    %v134 = vsel %vm108, %v32, 0
    %v137 = vsel %vm108, %v33, 0
    %v140 = vsel %vm108, %v34, 0
    %v143 = vsel %vm108, %v35, 0
    %145 = vmatprep.subr.mxu0 0.0
    %146 = vmatpush1.msra.mxu0 %v23
    %147 = vmatprep.subr.mxu0 0.0
    %148 = vmatpush1.msra.mxu0 0.0
    %149 = vmatprep.subr.mxu0 0.0
    %150 = vmatpush1.msra.mxu0 0.0
    %151 = vmatprep.subr.mxu0 0.0
    %152 = vmatpush1.msra.mxu0 0.0
    %153 = vmatprep.subr.mxu0 0.0
    %154 = vmatpush1.msra.mxu0 0.0
    %155 = vmatprep.subr.mxu0 0.0
    %156 = vmatpush1.msra.mxu0 0.0
    %157 = vmatprep.subr.mxu0 0.0
    %158 = vmatpush1.msra.mxu0 0.0
    %159 = vmatprep.subr.mxu0 0.0
    %160 = vmatpush1.msra.mxu0 0.0
    %161 = vmatprep.subr.mxu0 0.0
    %162 = vmatpush1.msra.mxu0 0.0
    %163 = vmatprep.subr.mxu0 0.0
    %164 = vmatpush1.msra.mxu0 0.0
    %165 = vmatprep.subr.mxu0 0.0
    %166 = vmatpush1.msra.mxu0 0.0
    %167 = vmatprep.subr.mxu0 0.0
    %168 = vmatpush1.msra.mxu0 0.0
    %169 = vmatprep.subr.mxu0 0.0
    %170 = vmatpush1.msra.mxu0 0.0
    %171 = vmatprep.subr.mxu0 0.0
    %172 = vmatpush1.msra.mxu0 0.0
    %173 = vmatprep.subr.mxu0 0.0
    %174 = vmatpush1.msra.mxu0 0.0
    %175 = vmatprep.subr.mxu0 0.0
    %176 = vmatpush1.msra.mxu0 0.0
    %177 = vmatprep.subr.mxu0 0.0
    %178 = vmatpush1.msra.mxu0 0.0
    %179 = vmatprep.subr.mxu0 0.0
    %180 = vmatpush1.msra.mxu0 0.0
    %181 = vmatprep.subr.mxu0 0.0
    %182 = vmatpush1.msra.mxu0 0.0
    %183 = vmatprep.subr.mxu0 0.0
    %184 = vmatpush1.msra.mxu0 0.0
    %185 = vmatprep.subr.mxu0 0.0
    %186 = vmatpush1.msra.mxu0 0.0
    %187 = vmatprep.subr.mxu0 0.0
    %188 = vmatpush1.msra.mxu0 0.0
    %189 = vmatprep.subr.mxu0 0.0
    %190 = vmatpush1.msra.mxu0 0.0
    %191 = vmatprep.subr.mxu0 0.0
    %192 = vmatpush1.msra.mxu0 0.0
    %193 = vmatprep.subr.mxu0 0.0
    %194 = vmatpush1.msra.mxu0 0.0
    %195 = vmatprep.subr.mxu0 0.0
    %196 = vmatpush1.msra.mxu0 0.0
    %197 = vmatprep.subr.mxu0 0.0
    %198 = vmatpush1.msra.mxu0 0.0
    %199 = vmatprep.subr.mxu0 0.0
    %200 = vmatpush1.msra.mxu0 0.0
    %201 = vmatprep.subr.mxu0 0.0
    %202 = vmatpush1.msra.mxu0 0.0
    %203 = vmatprep.subr.mxu0 0.0
    %204 = vmatpush1.msra.mxu0 0.0
    %205 = vmatprep.subr.mxu0 0.0
    %206 = vmatpush1.msra.mxu0 0.0
    %207 = vmatprep.subr.mxu0 0.0
    %208 = vmatpush1.msra.mxu0 0.0
    %209 = vmatprep.mubr.f32.mxu0 0.0
    %210 = vmatmul.mubr.f32.gmra.mrb[0].mxu0 %v110
    %v211 = vpop.f32.mrb[0].mxu0
    %v212 = vadd.f32 %v51, %v211
    %v213 = vpop.f32.mrb[0].mxu0
    %214 = vmatprep.mubr.f32.mxu0 0.0
    %215 = vmatmul.mubr.f32.gmra.mrb[0].mxu0 %v113
    %v216 = vpop.f32.mrb[0].mxu0
    %v217 = vadd.f32 %v56, %v216
    %v218 = vpop.f32.mrb[0].mxu0
    %219 = vmatprep.mubr.f32.mxu0 0.0
    %220 = vmatmul.mubr.f32.gmra.mrb[0].mxu0 %v116
    %v221 = vpop.f32.mrb[0].mxu0
    %v222 = vadd.f32 %v61, %v221
    %v223 = vpop.f32.mrb[0].mxu0
    %224 = vmatprep.mubr.f32.mxu0 0.0
    %225 = vmatmul.mubr.f32.gmra.mrb[0].mxu0 %v119
    %v226 = vpop.f32.mrb[0].mxu0
    %v227 = vadd.f32 %v66, %v226
    %v228 = vpop.f32.mrb[0].mxu0
    %229 = vmatprep.mubr.f32.mxu0 0.0
    %230 = vmatmul.mubr.f32.gmra.mrb[0].mxu0 %v122
    %v231 = vpop.f32.mrb[0].mxu0
    %v232 = vadd.f32 %v71, %v231
    %v233 = vpop.f32.mrb[0].mxu0
    %234 = vmatprep.mubr.f32.mxu0 0.0
    %235 = vmatmul.mubr.f32.gmra.mrb[0].mxu0 %v125
    %v236 = vpop.f32.mrb[0].mxu0
    %v237 = vadd.f32 %v76, %v236
    %v238 = vpop.f32.mrb[0].mxu0
    %239 = vmatprep.mubr.f32.mxu0 0.0
    %240 = vmatmul.mubr.f32.gmra.mrb[0].mxu0 %v128
    %v241 = vpop.f32.mrb[0].mxu0
    %v242 = vadd.f32 %v81, %v241
    %v243 = vpop.f32.mrb[0].mxu0
    %244 = vmatprep.mubr.f32.mxu0 0.0
    %245 = vmatmul.mubr.f32.gmra.mrb[0].mxu0 %v131
    %v246 = vpop.f32.mrb[0].mxu0
    %v247 = vadd.f32 %v86, %v246
    %v248 = vpop.f32.mrb[0].mxu0
    %249 = vmatprep.mubr.f32.mxu0 0.0
    %250 = vmatmul.mubr.f32.gmra.mrb[0].mxu0 %v134
    %v251 = vpop.f32.mrb[0].mxu0
    %v252 = vadd.f32 %v91, %v251
    %v253 = vpop.f32.mrb[0].mxu0
    %254 = vmatprep.mubr.f32.mxu0 0.0
    %255 = vmatmul.mubr.f32.gmra.mrb[0].mxu0 %v137
    %v256 = vpop.f32.mrb[0].mxu0
    %v257 = vadd.f32 %v96, %v256
    %v258 = vpop.f32.mrb[0].mxu0
    %259 = vmatprep.mubr.f32.mxu0 0.0
    %260 = vmatmul.mubr.f32.gmra.mrb[0].mxu0 %v140
    %v261 = vpop.f32.mrb[0].mxu0
    %v262 = vadd.f32 %v101, %v261
    %v263 = vpop.f32.mrb[0].mxu0
    %264 = vmatprep.mubr.f32.mxu0 0.0
    %265 = vmatmul.mubr.f32.gmra.mrb[0].mxu0 %v143
    %v266 = vpop.f32.mrb[0].mxu0
    %v267 = vadd.f32 %v106, %v266
    %v268 = vpop.f32.mrb[0].mxu0
    %269 = vdwg.mxu0
    %v270 = vmul.f32 %v212, 1.442695
    %v271 = vpow.pop %v270
    %v272 = vmul.f32 %v217, 1.442695
    %v273 = vpow.pop %v272
    %v274 = vmul.f32 %v222, 1.442695
    %v275 = vpow.pop %v274
    %v276 = vmul.f32 %v227, 1.442695
    %v277 = vpow.pop %v276
    %v278 = vmul.f32 %v232, 1.442695
    %v279 = vpow.pop %v278
    %v280 = vmul.f32 %v237, 1.442695
    %v281 = vpow.pop %v280
    %v282 = vmul.f32 %v21, %v271
    %v283 = vmul.f32 %v22, %v273
    %v284 = vadd.f32 %v282, %v242
    %v285 = vadd.f32 %v283, %v247
    %v286 = vmul.f32 %v284, %v275
    %v287 = vmul.f32 %v285, %v277
    %v288 = vadd.f32 %v286, %v252
    %v289 = vadd.f32 %v287, %v257
    %v290 = vmul.f32 %v288, %v279
    %v291 = vmul.f32 %v289, %v281
    %v292 = vadd.f32 %v290, %v262
    %v293 = vadd.f32 %v291, %v267
    %vm294 = vcmask 130048
    %295 = vst.msk [vmem:[#allocation2] sm:$0xff] %vm294, %v292
    %296 = vst.msk [vmem:[#allocation2 + $0x8] sm:$0xff] %vm294, %v293
    %v297 = vsel %vm294, %v212, 0.0
    %v298 = vsel %vm294, %v217, 0.0
    %v299 = vadd.f32 %v297, %v298
    %v300 = vsel %vm294, %v222, 0.0
    %v301 = vadd.f32 %v299, %v300
    %v302 = vsel %vm294, %v227, 0.0
    %v303 = vadd.f32 %v301, %v302
    %v304 = vsel %vm294, %v232, 0.0
    %v305 = vadd.f32 %v303, %v304
    %v306 = vsel %vm294, %v237, 0.0
    %v307 = vadd.f32 %v305, %v306
    %v308 = vrot.slane %v307, 4
    %v309 = vadd.f32 %v307, %v308
    %v310 = vrot.slane %v309, 2
    %v311 = vadd.f32 %v309, %v310
    %v312 = vrot.slane %v311, 1
    %v313 = vadd.f32 %v311, %v312
    %vm314 = vcmask 122880
    %315 = vst.msk [vmem:[#allocation4] sm:$0x1] %vm314, %v313
    // Predicated region
    $region18: #{tpu_custom_call.1} parent=1 // pred_check
      _
    $region19: #{tpu_custom_call.1} parent=1 // pred_check_branch
      %317 = sbr.rel (0) target = $region21
    $region20: #{tpu_custom_call.1} parent=1 // pred_region
      %s319 = ssub.s32 256, 256
      %320 = vsyncadd [#allocation3], %s319
      %s321 = sshll.u32 [#allocation2], 4
      %s322 = int_to_ptr.vmem [resolvable:$true] %s321
      %327 = dma.vmem_to_hbm [thread:$0]  %s322, 256, %s4, [#allocation3], 128, 128, 8
    $region21: #{tpu_custom_call.1} parent=1 // pred_fallthru
      _
    // Predicated region
    $region22: #{tpu_custom_call.1} parent=1 // pred_check
      _
    $region23: #{tpu_custom_call.1} parent=1 // pred_check_branch
      %329 = sbr.rel (0) target = $region25
    $region24: #{tpu_custom_call.1} parent=1 // pred_region
      %s331 = ssub.s32 16, 16
      %332 = vsyncadd [#allocation5], %s331
      %s334 = sshll.u32 [#allocation4], 4
      %s335 = int_to_ptr.vmem [resolvable:$true] %s334
      %337 = dma.vmem_to_hbm [thread:$0]  %s335, 16, %s5, [#allocation5]
    $region25: #{tpu_custom_call.1} parent=1 // pred_fallthru
      _
    // Predicated region
    $region26: #{tpu_custom_call.1} parent=1 // pred_check
      _
    $region27: #{tpu_custom_call.1} parent=1 // pred_check_branch
      %339 = sbr.rel (0) target = $region29
    $region28: #{tpu_custom_call.1} parent=1 // pred_region
      %340 = dma.done [#allocation3], 256
    $region29: #{tpu_custom_call.1} parent=1 // pred_fallthru
      _
    // Predicated region
    $region30: #{tpu_custom_call.1} parent=1 // pred_check
      _
    $region31: #{tpu_custom_call.1} parent=1 // pred_check_branch
      %342 = sbr.rel (0) target = $region33
    $region32: #{tpu_custom_call.1} parent=1 // pred_region
      %343 = dma.done [#allocation5], 16
    $region33: #{tpu_custom_call.1} parent=1 // pred_fallthru
      _
    %344 = vsyncpa [#allocation3], 1
    %345 = vsyncpa [#allocation5], 1

</llo_original>
